<compile_context>
chip_gen: v6e
topology: v6e:2x2x1
jax: 0.10.0
libtpu: 0.0.40
codegen_flags: <defaults>
</compile_context>

<pallas_src>
import math

import jax
import jax.numpy as jnp
from jax.experimental import pallas as pl
from jax.experimental.pallas import tpu as pltpu

_MIB = 1024 * 1024


def _round_up(x, m):
    return ((x + m - 1) // m) * m


def _divisor_tile(n, cap, align):
    """Largest multiple of `align` that divides n and is <= cap (fallback: n)."""
    t = min(cap, n)
    t -= t % align
    while t >= align:
        if n % t == 0:
            return t
        t -= align
    return n


def _vmem_limit_bytes():
    """Scoped-VMEM limit: physical capacity minus headroom (generation aware)."""
    cap = 64 * _MIB  # conservative default (v7x per-TensorCore capacity)
    try:
        info = pltpu.get_tpu_info()
        cap = int(getattr(info, "vmem_capacity_bytes", cap))
    except Exception:
        pass
    return max(cap - 16 * _MIB, 32 * _MIB)


def _fused_vmem_bytes(tm, ti, dim, in_itemsize, out_itemsize):
    """Estimated resident VMEM for one grid step, incl. double buffering."""
    db = 2
    x_b = db * tm * dim * in_itemsize
    w13_b = db * 2 * dim * ti * in_itemsize      # w1 tile + w3 tile
    w2_b = db * ti * dim * in_itemsize
    out_b = db * tm * dim * out_itemsize
    acc_b = tm * dim * 4                          # f32 accumulator scratch
    return x_b + w13_b + w2_b + out_b + acc_b


def _select_tiles(padded_rows, inter_p, dim, in_itemsize, out_itemsize,
                  row_align, budget):
    tm_cap, ti_cap = 1024, 1024
    while True:
        tm = _divisor_tile(padded_rows, tm_cap, row_align)
        # Prefer >= 2 row blocks so both v7x TensorCores get work on the
        # "parallel" axis (only when rows are actually splittable).
        if padded_rows // tm < 2:
            tm_alt = _divisor_tile(padded_rows, max(row_align, padded_rows // 2),
                                   row_align)
            if tm_alt < padded_rows:
                tm = tm_alt
        ti = _divisor_tile(inter_p, ti_cap, 128)
        if _fused_vmem_bytes(tm, ti, dim, in_itemsize, out_itemsize) <= budget:
            return tm, ti
        if ti_cap > 128:        # shrinking ti only adds per-step overhead
            ti_cap //= 2
        elif tm_cap > row_align:  # shrinking tm increases weight re-reads
            tm_cap //= 2
        else:
            # TODO(synk): for extreme `dim` even minimum tiles may not fit the
            # budget; an extra grid axis tiling `dim` would be needed then.
            return tm, ti


def _fused_swiglu_kernel(x_ref, w1_ref, w3_ref, w2_ref, o_ref, acc_ref):
    """grid = (row_tiles, inter_tiles); inter is the down-proj reduction axis.

    Per step: gated = silu(x @ w1_j) * (x @ w3_j)   -> (tm, ti)
              acc  += gated @ w2_j                  -> (tm, dim)
    x / o / acc stay resident across j (index maps constant in j).
    """
    j = pl.program_id(1)

    @pl.when(j == 0)
    def _():
        acc_ref[...] = jnp.zeros_like(acc_ref)

    x = x_ref[...]
    h1 = jnp.dot(x, w1_ref[...], preferred_element_type=jnp.float32)
    h3 = jnp.dot(x, w3_ref[...], preferred_element_type=jnp.float32)
    # silu(h1) = h1 * sigmoid(h1); exp and approx-reciprocal both run on EUP.
    sig = pl.reciprocal(1.0 + jnp.exp(-h1), approx=True)
    gated = (h1 * sig * h3).astype(w2_ref.dtype)
    acc_ref[...] += jnp.dot(gated, w2_ref[...], preferred_element_type=jnp.float32)

    @pl.when(j == pl.num_programs(1) - 1)
    def _():
        o_ref[...] = acc_ref[...].astype(o_ref.dtype)


def prepare_mlp_params(w1, w2, w3, use_bf16=False):
    """One-time (parameter-load-time) weight preparation.

    Transposes torch-layout (out, in) weights to (in, out) so the kernel does
    plain x @ w, and zero-pads the inter dimension to a multiple of 128 so the
    kernel never pulls a full non-divisible dimension into VMEM.  Optionally
    casts operands to bf16 (f32 accumulation is kept inside the kernel).
    """
    inter, dim = w1.shape
    assert w3.shape == (inter, dim), w3.shape
    assert w2.shape == (dim, inter), w2.shape

    inter_p = _round_up(inter, 128)
    pad = inter_p - inter

    w1t = jnp.transpose(w1)          # (dim, inter)
    w3t = jnp.transpose(w3)          # (dim, inter)
    w2t = jnp.transpose(w2)          # (inter, dim)
    if pad:
        w1t = jnp.pad(w1t, ((0, 0), (0, pad)))
        w3t = jnp.pad(w3t, ((0, 0), (0, pad)))
        w2t = jnp.pad(w2t, ((0, pad), (0, 0)))

    dtype = jnp.bfloat16 if use_bf16 else w1.dtype
    return w1t.astype(dtype), w3t.astype(dtype), w2t.astype(dtype)


def mlp_forward(x, params):
    """SwiGLU MLP forward, fused into one Pallas kernel.

    `params` comes from prepare_mlp_params (already transposed / padded /
    optionally bf16 — a load-time cost, not a per-call one).
    """
    w1t, w3t, w2t = params
    dim, inter_p = w1t.shape
    orig_shape = x.shape
    assert orig_shape[-1] == dim

    rows = math.prod(orig_shape[:-1])
    x2d = x.reshape(rows, dim).astype(w1t.dtype)

    out_dtype = x.dtype
    in_itemsize = x2d.dtype.itemsize
    out_itemsize = jnp.dtype(out_dtype).itemsize
    # dtype-aware sublane alignment: 8 for 4-byte, 16 for 2-byte, 32 for 1-byte
    row_align = max(8 * (4 // in_itemsize), 8 * (4 // out_itemsize))

    padded_rows = _round_up(max(rows, 1), row_align)
    if padded_rows != rows:
        x2d = jnp.pad(x2d, ((0, padded_rows - rows), (0, 0)))

    vmem_limit = _vmem_limit_bytes()
    budget = (vmem_limit * 3) // 4
    tm, ti = _select_tiles(padded_rows, inter_p, dim, in_itemsize, out_itemsize,
                           row_align, budget)
    m_blocks = padded_rows // tm

    cost = pl.CostEstimate(
        flops=6 * padded_rows * dim * inter_p + 6 * padded_rows * inter_p,
        transcendentals=padded_rows * inter_p,
        # x read once (resident across j); each weight read once per row block
        # (the real tile re-read factor); output written once.
        bytes_accessed=(padded_rows * dim * in_itemsize
                        + m_blocks * 3 * dim * inter_p * in_itemsize
                        + padded_rows * dim * out_itemsize),
    )

    out = pl.pallas_call(
        _fused_swiglu_kernel,
        out_shape=jax.ShapeDtypeStruct((padded_rows, dim), out_dtype),
        grid_spec=pltpu.PrefetchScalarGridSpec(
            num_scalar_prefetch=0,
            grid=(m_blocks, inter_p // ti),
            in_specs=[
                pl.BlockSpec((tm, dim), lambda i, j: (i, 0)),   # x (resident over j)
                pl.BlockSpec((dim, ti), lambda i, j: (0, j)),   # w1^T tile
                pl.BlockSpec((dim, ti), lambda i, j: (0, j)),   # w3^T tile
                pl.BlockSpec((ti, dim), lambda i, j: (j, 0)),   # w2^T tile
            ],
            out_specs=pl.BlockSpec((tm, dim), lambda i, j: (i, 0)),
            scratch_shapes=[pltpu.VMEM((tm, dim), jnp.float32)],
        ),
        compiler_params=pltpu.CompilerParams(
            dimension_semantics=("parallel", "arbitrary"),
            vmem_limit_bytes=vmem_limit,
        ),
        cost_estimate=cost,
    )(x2d, w1t, w3t, w2t)

    if padded_rows != rows:
        out = out[:rows]
    return out.reshape(orig_shape)


def mlp_ref(x, w1, w2, w3):
    h1 = x @ w1.T
    h3 = x @ w3.T
    return (jax.nn.silu(h1) * h3) @ w2.T


if __name__ == "__main__":
    key = jax.random.PRNGKey(0)

    # Primary check: small shapes consistent with the module (f32 weights).
    batch, seq, dim, inter_dim = 2, 8, 128, 256
    kx, k1, k2, k3, key = jax.random.split(key, 5)
    x = jax.random.normal(kx, (batch, seq, dim), jnp.float32)
    # Match nn.Parameter(torch.randn(out, in) * in**-0.5), bias=False.
    w1 = jax.random.normal(k1, (inter_dim, dim), jnp.float32) * dim ** -0.5
    w3 = jax.random.normal(k3, (inter_dim, dim), jnp.float32) * dim ** -0.5
    w2 = jax.random.normal(k2, (dim, inter_dim), jnp.float32) * inter_dim ** -0.5

    params = prepare_mlp_params(w1, w2, w3)          # one-time, load-time
    out = mlp_forward(x, params)
    jax.block_until_ready(out)

    ref = mlp_ref(x, w1, w2, w3)
    assert out.shape == x.shape
    err = float(jnp.max(jnp.abs(out - ref)))
    assert jnp.allclose(out, ref, atol=2e-2, rtol=2e-2), err

    # Ragged shapes: rows not a multiple of 8, inter not a multiple of 128.
    b2, s2, d2, i2 = 2, 5, 128, 320
    kx, k1, k2, k3, key = jax.random.split(key, 5)
    x2 = jax.random.normal(kx, (b2, s2, d2), jnp.float32)
    w1b = jax.random.normal(k1, (i2, d2), jnp.float32) * d2 ** -0.5
    w3b = jax.random.normal(k3, (i2, d2), jnp.float32) * d2 ** -0.5
    w2b = jax.random.normal(k2, (d2, i2), jnp.float32) * i2 ** -0.5
    out2 = mlp_forward(x2, prepare_mlp_params(w1b, w2b, w3b))
    jax.block_until_ready(out2)
    ref2 = mlp_ref(x2, w1b, w2b, w3b)
    err2 = float(jnp.max(jnp.abs(out2 - ref2)))
    assert jnp.allclose(out2, ref2, atol=2e-2, rtol=2e-2), err2

    # Optional bf16-operand mode (f32 accumulation) — looser tolerance.
    params_bf16 = prepare_mlp_params(w1, w2, w3, use_bf16=True)
    out_bf16 = mlp_forward(x, params_bf16)
    jax.block_until_ready(out_bf16)
    err_bf16 = float(jnp.max(jnp.abs(out_bf16 - ref)))
    assert err_bf16 < 0.25, err_bf16

    print("KERNEL_OK")
</pallas_src>

<mosaic_0001>
module attributes {stable_mosaic.version = 11 : i64} {
  func.func @_fused_swiglu_kernel(%arg0: i32, %arg1: i32, %arg2: memref<8x128xf32, #tpu.memory_space<vmem>>, %arg3: memref<128x256xf32, #tpu.memory_space<vmem>>, %arg4: memref<128x256xf32, #tpu.memory_space<vmem>>, %arg5: memref<256x128xf32, #tpu.memory_space<vmem>>, %arg6: memref<8x128xf32, #tpu.memory_space<vmem>>, %arg7: memref<8x128xf32, #tpu.memory_space<vmem>>) attributes {dimension_semantics = [#tpu.dimension_semantics<parallel>, #tpu.dimension_semantics<arbitrary>], iteration_bounds = array<i64: 2, 1>, scalar_prefetch = 0 : i64, scratch_operands = 1 : i64, tpu.core_type = #tpu.core_type<tc>, window_params = [{transform_indices = @transform_0, window_bounds = array<i64: 8, 128>}, {transform_indices = @transform_1, window_bounds = array<i64: 128, 256>}, {transform_indices = @transform_2, window_bounds = array<i64: 128, 256>}, {transform_indices = @transform_3, window_bounds = array<i64: 256, 128>}, {transform_indices = @transform_4, window_bounds = array<i64: 8, 128>}]} {
    %c0_i32 = arith.constant 0 : i32
    %0 = arith.cmpi eq, %arg1, %c0_i32 : i32
    %1 = arith.extui %0 : i1 to i32
    %c0_i32_0 = arith.constant 0 : i32
    %2 = arith.cmpi ne, %1, %c0_i32_0 : i32
    scf.if %2 {
      %cst_18 = arith.constant 0.000000e+00 : f32
      %24 = vector.broadcast %cst_18 : f32 to vector<8x128xf32>
      %c0_19 = arith.constant 0 : index
      %c0_20 = arith.constant 0 : index
      %25 = vector.load %arg7[%c0_19, %c0_20] : memref<8x128xf32, #tpu.memory_space<vmem>>, vector<8x128xf32>
      tpu.vector_store %arg7[%c0_19, %c0_20], %24 {strides = array<i32>} : memref<8x128xf32, #tpu.memory_space<vmem>>, vector<8x128xf32>,
    } else {
    }
    %c0 = arith.constant 0 : index
    %c0_1 = arith.constant 0 : index
    %3 = vector.load %arg2[%c0, %c0_1] : memref<8x128xf32, #tpu.memory_space<vmem>>, vector<8x128xf32>
    %c0_2 = arith.constant 0 : index
    %c0_3 = arith.constant 0 : index
    %4 = vector.load %arg3[%c0_2, %c0_3] : memref<128x256xf32, #tpu.memory_space<vmem>>, vector<128x256xf32>
    %cst = arith.constant dense<0.000000e+00> : vector<8x256xf32>
    %5 = tpu.matmul %3, %4, %cst {dimension_numbers = #tpu.dot_dimension_numbers<[1], [0], [0], [1], [0, 0, 1, 1], [], []>} : vector<8x128xf32>, vector<128x256xf32>, vector<8x256xf32> -> vector<8x256xf32>
    %c0_4 = arith.constant 0 : index
    %c0_5 = arith.constant 0 : index
    %6 = vector.load %arg4[%c0_4, %c0_5] : memref<128x256xf32, #tpu.memory_space<vmem>>, vector<128x256xf32>
    %cst_6 = arith.constant dense<0.000000e+00> : vector<8x256xf32>
    %7 = tpu.matmul %3, %6, %cst_6 {dimension_numbers = #tpu.dot_dimension_numbers<[1], [0], [0], [1], [0, 0, 1, 1], [], []>} : vector<8x128xf32>, vector<128x256xf32>, vector<8x256xf32> -> vector<8x256xf32>
    %cst_7 = arith.constant 0.000000e+00 : f32
    %8 = vector.broadcast %cst_7 : f32 to vector<8x256xf32>
    %9 = arith.subf %8, %5 : vector<8x256xf32>
    %10 = math.exp %9 : vector<8x256xf32>
    %cst_8 = arith.constant 1.000000e+00 : f32
    %11 = vector.broadcast %cst_8 : f32 to vector<8x256xf32>
    %12 = arith.addf %11, %10 : vector<8x256xf32>
    %13 = tpu.reciprocal %12 {approx = true} : vector<8x256xf32> -> vector<8x256xf32>
    %14 = arith.mulf %5, %13 : vector<8x256xf32>
    %15 = arith.mulf %14, %7 : vector<8x256xf32>
    %c0_9 = arith.constant 0 : index
    %c0_10 = arith.constant 0 : index
    %16 = vector.load %arg7[%c0_9, %c0_10] : memref<8x128xf32, #tpu.memory_space<vmem>>, vector<8x128xf32>
    %c0_11 = arith.constant 0 : index
    %c0_12 = arith.constant 0 : index
    %17 = vector.load %arg5[%c0_11, %c0_12] : memref<256x128xf32, #tpu.memory_space<vmem>>, vector<256x128xf32>
    %cst_13 = arith.constant dense<0.000000e+00> : vector<8x128xf32>
    %18 = tpu.matmul %15, %17, %cst_13 {dimension_numbers = #tpu.dot_dimension_numbers<[1], [0], [0], [1], [0, 0, 1, 1], [], []>} : vector<8x256xf32>, vector<256x128xf32>, vector<8x128xf32> -> vector<8x128xf32>
    %19 = arith.addf %16, %18 : vector<8x128xf32>
    %c0_14 = arith.constant 0 : index
    %c0_15 = arith.constant 0 : index
    %20 = vector.load %arg7[%c0_14, %c0_15] : memref<8x128xf32, #tpu.memory_space<vmem>>, vector<8x128xf32>
    tpu.vector_store %arg7[%c0_14, %c0_15], %19 {strides = array<i32>} : memref<8x128xf32, #tpu.memory_space<vmem>>, vector<8x128xf32>,
    %c0_i32_16 = arith.constant 0 : i32
    %21 = arith.cmpi eq, %arg1, %c0_i32_16 : i32
    %22 = arith.extui %21 : i1 to i32
    %c0_i32_17 = arith.constant 0 : i32
    %23 = arith.cmpi ne, %22, %c0_i32_17 : i32
    scf.if %23 {
      %c0_18 = arith.constant 0 : index
      %c0_19 = arith.constant 0 : index
      %24 = vector.load %arg7[%c0_18, %c0_19] : memref<8x128xf32, #tpu.memory_space<vmem>>, vector<8x128xf32>
      %c0_20 = arith.constant 0 : index
      %c0_21 = arith.constant 0 : index
      %25 = vector.load %arg6[%c0_20, %c0_21] : memref<8x128xf32, #tpu.memory_space<vmem>>, vector<8x128xf32>
      tpu.vector_store %arg6[%c0_20, %c0_21], %24 {strides = array<i32>} : memref<8x128xf32, #tpu.memory_space<vmem>>, vector<8x128xf32>,
    } else {
    }
    return
  }
  func.func @transform_0(%arg0: i32, %arg1: i32) -> (i32, i32) {
    %c0_i32 = arith.constant 0 : i32
    %c0_i32_0 = arith.constant 0 : i32
    return %arg0, %c0_i32 : i32, i32
  }
  func.func @transform_1(%arg0: i32, %arg1: i32) -> (i32, i32) {
    %c0_i32 = arith.constant 0 : i32
    %c0_i32_0 = arith.constant 0 : i32
    return %c0_i32, %arg1 : i32, i32
  }
  func.func @transform_2(%arg0: i32, %arg1: i32) -> (i32, i32) {
    %c0_i32 = arith.constant 0 : i32
    %c0_i32_0 = arith.constant 0 : i32
    return %c0_i32, %arg1 : i32, i32
  }
  func.func @transform_3(%arg0: i32, %arg1: i32) -> (i32, i32) {
    %c0_i32 = arith.constant 0 : i32
    %c0_i32_0 = arith.constant 0 : i32
    return %arg1, %c0_i32 : i32, i32
  }
  func.func @transform_4(%arg0: i32, %arg1: i32) -> (i32, i32) {
    %c0_i32 = arith.constant 0 : i32
    %c0_i32_0 = arith.constant 0 : i32
    return %arg0, %c0_i32 : i32, i32
  }
}

</mosaic_0001>

<llo_original>
// kernel: tpu_custom_call.1
$region0: #{tpu_custom_call.1}
  #allocation0 [shape = 'u32[]', space=smem, size = 0x4, offset = 0x4, fixed_abs, tag = 'smem constant byte address 0x4 - core index']
  #allocation1 [shape = 'u32[144,128]{1,0:T(1,128)}', space=vmem, size = 0x12000, scoped, tag = 'internal scratch']
  #allocation2 [shape = 'f32[8,128]{1,0:T(8,128)}', space=vmem, size = 0x1000, scoped, tag = 'scratch operand']
  %s0 = inlined_call_operand.hbm [shape: f32[16,128], index: 0, kind: input, shape index: {}]
  %s1 = inlined_call_operand.hbm [shape: f32[128,256], index: 1, kind: input, shape index: {}]
  %s2 = inlined_call_operand.hbm [shape: f32[128,256], index: 2, kind: input, shape index: {}]
  %s3 = inlined_call_operand.hbm [shape: f32[256,128], index: 3, kind: input, shape index: {}]
  %s4 = inlined_call_operand.hbm [shape: f32[16,128], index: 4, kind: output, shape index: {}]
  %s5 = sld [smem:[#allocation0]]
  $region73: #{tpu_custom_call.1} parent=0
    _
  %s7 = ssub.s32 1, %s5
  %s8 = scalar_select 0, %s7, %s5
  $region1: #{tpu_custom_call.1} parent=0
    #allocation3 [shape = 'u8[8192]{0}', space=vmem, size = 0x2000, scoped, tag = 'input window, operand 0']
    #allocation4 [shape = 's32[2]{0}', space=sflag, size = 0x8, scoped, tag = 'scoped memory for tpu_custom_call.1']
    #allocation5 [shape = 's32[2]{0}', space=sflag, size = 0x8, scoped, tag = 'scoped memory for tpu_custom_call.1']
    #allocation6 [shape = 'u8[131072]{0}', space=vmem, size = 0x20000, scoped, tag = 'input window, operand 1, single buffered']
    #allocation7 [shape = 's32[1]{0}', space=sflag, size = 0x4, scoped, tag = 'scoped memory for tpu_custom_call.1']
    #allocation8 [shape = 'u8[131072]{0}', space=vmem, size = 0x20000, scoped, tag = 'input window, operand 2, single buffered']
    #allocation9 [shape = 'u8[131072]{0}', space=vmem, size = 0x20000, scoped, tag = 'input window, operand 3, single buffered']
    #allocation10 [shape = 's32[1]{0}', space=sflag, size = 0x4, scoped, tag = 'scoped memory for tpu_custom_call.1']
    #allocation11 [shape = 'u8[8192]{0}', space=vmem, size = 0x2000, scoped, tag = 'output window, operand 0']
    %9 = vsyncpa [#allocation4], 0
    %s10 = scalar_lea.sflag [#allocation4], 1
    %11 = vsyncpa %s10, 0
    %12 = vsyncpa [#allocation7], 0
    %13 = vsyncpa [#allocation10], 0
    %14 = vsyncpa [#allocation5], 0
    %s15 = scalar_lea.sflag [#allocation5], 1
    %16 = vsyncpa %s15, 0
    loop: start=0, step=1, limit=4
    $region2: #{tpu_custom_call.1} parent=1 // loop_pre_header
      _
    $region3: #{tpu_custom_call.1} parent=1 // loop_header
      %s18 = sphi 0, %s22
      %p19 = scmp.ge.s32.totalorder %s18, 4
      %s25 = sphi 0, %s37
      %s26 = sphi 0, %s33
      %s27 = sphi 0, %s25
      %s28 = sphi 0, %s26
      %s29 = sphi 0, %s27
      %s30 = sphi 0, %s28
      %s40 = sphi 0, %s42
      %s43 = sphi 0, %s40
      %s44 = sphi 0, %s43
      %s60 = sphi 0, %s44
      %s66 = sphi 0, %s68
      %s69 = sphi 0, %s66
      %s70 = sphi 0, %s69
      %s86 = sphi 0, %s70
      %s92 = sphi 0, %s94
      %s95 = sphi 0, %s92
      %s96 = sphi 0, %s95
      %s112 = sphi 0, %s96
      %s118 = sphi 0, %s120
      %s121 = sphi 0, %s118
      %s122 = sphi 0, %s121
      %s138 = sphi 0, %s122
      %s144 = sphi 0, %s146
      %s147 = sphi 0, %s144
      %s148 = sphi 0, %s147
      %s164 = sphi 0, %s148
    $region4: #{tpu_custom_call.1} parent=1 // loop_header_branch
      %21 = sbr.rel (%p19) target = $region8
    $region5: #{tpu_custom_call.1} parent=1 // loop_body
      %s23 = ssub.s32 %s18, 1
      %s24 = ssub.s32 %s18, 2
      %s31 = sadd.s32 1, %s26
      %p32 = scmp.ge.s32.totalorder %s31, 1
      %s33 = scalar_select %p32, 0, %s31
      %s34 = sadd.s32 1, %s25
      %s35 = scalar_select %p32, %s34, %s25
      %p36 = scmp.ge.s32.totalorder %s35, 2
      %s37 = scalar_select %p36, 0, %s35
      %s38 = ssub.s32 %s25, %s37
      %p39 = scmp.eq.s32.totalorder %s38, 0
      %s41 = sadd.s32 %s40, 1
      %s42 = scalar_select %p39, %s40, %s41
      %p45 = pneg %p39
      %p46 = scmp.eq.s32.totalorder %s18, 1
      %p47 = por %p45, %p46
      %p48 = scmp.ne.s32.totalorder %s40, %s43
      %p49 = scmp.eq.s32.totalorder %s18, 0
      %p50 = por %p48, %p49
      %p51 = scmp.ne.s32.totalorder %s40, %s43
      %p52 = scmp.eq.s32.totalorder %s23, 1
      %p53 = por %p51, %p52
      %p54 = scmp.ne.s32.totalorder %s43, %s44
      %p55 = scmp.eq.s32.totalorder %s23, 0
      %p56 = por %p54, %p55
      %p57 = scmp.ne.s32.totalorder %s43, %s44
      %p58 = scmp.eq.s32.totalorder %s24, 1
      %p59 = por %p57, %p58
      %p61 = scmp.ne.s32.totalorder %s44, %s60
      %p62 = scmp.eq.s32.totalorder %s24, 0
      %p63 = por %p61, %p62
      %s64 = ssub.s32 %s26, %s33
      %p65 = scmp.eq.s32.totalorder %s64, 0
      %s67 = sadd.s32 %s66, 1
      %s68 = scalar_select %p65, %s66, %s67
      %p71 = pneg %p65
      %p72 = scmp.eq.s32.totalorder %s18, 1
      %p73 = por %p71, %p72
      %p74 = scmp.ne.s32.totalorder %s66, %s69
      %p75 = scmp.eq.s32.totalorder %s18, 0
      %p76 = por %p74, %p75
      %p77 = scmp.ne.s32.totalorder %s66, %s69
      %p78 = scmp.eq.s32.totalorder %s23, 1
      %p79 = por %p77, %p78
      %p80 = scmp.ne.s32.totalorder %s69, %s70
      %p81 = scmp.eq.s32.totalorder %s23, 0
      %p82 = por %p80, %p81
      %p83 = scmp.ne.s32.totalorder %s69, %s70
      %p84 = scmp.eq.s32.totalorder %s24, 1
      %p85 = por %p83, %p84
      %p87 = scmp.ne.s32.totalorder %s70, %s86
      %p88 = scmp.eq.s32.totalorder %s24, 0
      %p89 = por %p87, %p88
      %s90 = ssub.s32 %s26, %s33
      %p91 = scmp.eq.s32.totalorder %s90, 0
      %s93 = sadd.s32 %s92, 1
      %s94 = scalar_select %p91, %s92, %s93
      %p97 = pneg %p91
      %p98 = scmp.eq.s32.totalorder %s18, 1
      %p99 = por %p97, %p98
      %p100 = scmp.ne.s32.totalorder %s92, %s95
      %p101 = scmp.eq.s32.totalorder %s18, 0
      %p102 = por %p100, %p101
      %p103 = scmp.ne.s32.totalorder %s92, %s95
      %p104 = scmp.eq.s32.totalorder %s23, 1
      %p105 = por %p103, %p104
      %p106 = scmp.ne.s32.totalorder %s95, %s96
      %p107 = scmp.eq.s32.totalorder %s23, 0
      %p108 = por %p106, %p107
      %p109 = scmp.ne.s32.totalorder %s95, %s96
      %p110 = scmp.eq.s32.totalorder %s24, 1
      %p111 = por %p109, %p110
      %p113 = scmp.ne.s32.totalorder %s96, %s112
      %p114 = scmp.eq.s32.totalorder %s24, 0
      %p115 = por %p113, %p114
      %s116 = ssub.s32 %s26, %s33
      %p117 = scmp.eq.s32.totalorder %s116, 0
      %s119 = sadd.s32 %s118, 1
      %s120 = scalar_select %p117, %s118, %s119
      %p123 = pneg %p117
      %p124 = scmp.eq.s32.totalorder %s18, 1
      %p125 = por %p123, %p124
      %p126 = scmp.ne.s32.totalorder %s118, %s121
      %p127 = scmp.eq.s32.totalorder %s18, 0
      %p128 = por %p126, %p127
      %p129 = scmp.ne.s32.totalorder %s118, %s121
      %p130 = scmp.eq.s32.totalorder %s23, 1
      %p131 = por %p129, %p130
      %p132 = scmp.ne.s32.totalorder %s121, %s122
      %p133 = scmp.eq.s32.totalorder %s23, 0
      %p134 = por %p132, %p133
      %p135 = scmp.ne.s32.totalorder %s121, %s122
      %p136 = scmp.eq.s32.totalorder %s24, 1
      %p137 = por %p135, %p136
      %p139 = scmp.ne.s32.totalorder %s122, %s138
      %p140 = scmp.eq.s32.totalorder %s24, 0
      %p141 = por %p139, %p140
      %s142 = ssub.s32 %s25, %s37
      %p143 = scmp.eq.s32.totalorder %s142, 0
      %s145 = sadd.s32 %s144, 1
      %s146 = scalar_select %p143, %s144, %s145
      %p149 = pneg %p143
      %p150 = scmp.eq.s32.totalorder %s18, 1
      %p151 = por %p149, %p150
      %p152 = scmp.ne.s32.totalorder %s144, %s147
      %p153 = scmp.eq.s32.totalorder %s18, 0
      %p154 = por %p152, %p153
      %p155 = scmp.ne.s32.totalorder %s144, %s147
      %p156 = scmp.eq.s32.totalorder %s23, 1
      %p157 = por %p155, %p156
      %p158 = scmp.ne.s32.totalorder %s147, %s148
      %p159 = scmp.eq.s32.totalorder %s23, 0
      %p160 = por %p158, %p159
      %p161 = scmp.ne.s32.totalorder %s147, %s148
      %p162 = scmp.eq.s32.totalorder %s24, 1
      %p163 = por %p161, %p162
      %p165 = scmp.ne.s32.totalorder %s148, %s164
      %p166 = scmp.eq.s32.totalorder %s24, 0
      %p167 = por %p165, %p166
      %p168 = scmp.le.s32.totalorder 1, %s18
      %p169 = scmp.lt.s32.totalorder %s18, 3
      %p170 = pnand %p168, %p169
      %p171 = pneg %p170
      // Predicated region
      $region9: #{tpu_custom_call.1} parent=5 // pred_check
        _
      $region10: #{tpu_custom_call.1} parent=5 // pred_check_branch
        %173 = sbr.rel (%p170) target = $region12
      $region11: #{tpu_custom_call.1} parent=5 // pred_region
        %s174 = ssub.s32 %s18, 1
        // Predicated region
        $region13: #{tpu_custom_call.1} parent=11 // pred_check
          %p175 = pneg %p82
        $region14: #{tpu_custom_call.1} parent=11 // pred_check_branch
          %177 = sbr.rel (%p175) target = $region16
        $region15: #{tpu_custom_call.1} parent=11 // pred_region
          %s178 = smul.u32 2, %s28
          %s180 = ssub.s32 4096, 4096
          %181 = vsyncadd [#allocation7], %s180
          %s182 = smul.addr %s178, 128
          %s183 = scalar_lea.hbm %s1, %s182
          %s184 = sshll.u32 [#allocation6], 4
          %s185 = int_to_ptr.vmem [resolvable:$true] %s184
          %190 = dma.hbm_to_vmem [thread:$0]  %s183, 4096, %s185, [#allocation7], 256, 256, 16
        $region16: #{tpu_custom_call.1} parent=11 // pred_fallthru
          _
        // Predicated region
        $region17: #{tpu_custom_call.1} parent=11 // pred_check
          %p191 = pneg %p108
        $region18: #{tpu_custom_call.1} parent=11 // pred_check_branch
          %193 = sbr.rel (%p191) target = $region20
        $region19: #{tpu_custom_call.1} parent=11 // pred_region
          %s194 = smul.u32 2, %s28
          %s196 = ssub.s32 4096, 4096
          %197 = vsyncadd [#allocation7], %s196
          %s198 = smul.addr %s194, 128
          %s199 = scalar_lea.hbm %s2, %s198
          %s200 = sshll.u32 [#allocation8], 4
          %s201 = int_to_ptr.vmem [resolvable:$true] %s200
          %206 = dma.hbm_to_vmem [thread:$0]  %s199, 4096, %s201, [#allocation7], 256, 256, 16
        $region20: #{tpu_custom_call.1} parent=11 // pred_fallthru
          _
        // Predicated region
        $region21: #{tpu_custom_call.1} parent=11 // pred_check
          %p207 = pneg %p134
        $region22: #{tpu_custom_call.1} parent=11 // pred_check_branch
          %209 = sbr.rel (%p207) target = $region24
        $region23: #{tpu_custom_call.1} parent=11 // pred_region
          %s210 = smul.u32 32, %s28
          %s212 = ssub.s32 4096, 4096
          %213 = vsyncadd [#allocation10], %s212
          %s214 = smul.addr %s210, 128
          %s215 = scalar_lea.hbm %s3, %s214
          %s216 = sshll.u32 [#allocation9], 4
          %s217 = int_to_ptr.vmem [resolvable:$true] %s216
          %222 = dma.hbm_to_vmem [thread:$0]  %s215, 4096, %s217, [#allocation10], 128, 128, 8
        $region24: #{tpu_custom_call.1} parent=11 // pred_fallthru
          _
      $region12: #{tpu_custom_call.1} parent=5 // pred_fallthru
        _
      %p223 = scmp.lt.s32.totalorder %s18, 2
      // Predicated region
      $region25: #{tpu_custom_call.1} parent=5 // pred_check
        %p224 = pneg %p223
      $region26: #{tpu_custom_call.1} parent=5 // pred_check_branch
        %226 = sbr.rel (%p224) target = $region28
      $region27: #{tpu_custom_call.1} parent=5 // pred_region
        // Predicated region
        $region29: #{tpu_custom_call.1} parent=27 // pred_check
          %p227 = pneg %p50
        $region30: #{tpu_custom_call.1} parent=27 // pred_check_branch
          %229 = sbr.rel (%p227) target = $region32
        $region31: #{tpu_custom_call.1} parent=27 // pred_region
          %s230 = sand.u32 %s40, 1
          %s231 = scalar_lea.sflag [#allocation4], %s230
          %s232 = sand.u32 %s40, 1
          %s233 = smul.addr %s232, 8
          %s234 = scalar_lea.vmem [#allocation3], %s233
          %s236 = ssub.s32 128, 128
          %237 = vsyncadd %s231, %s236
          %s238 = smul.addr %s25, 128
          %s239 = scalar_lea.hbm %s0, %s238
          %s241 = sshll.u32 %s234, 4
          %s242 = int_to_ptr.vmem [resolvable:$true] %s241
          %244 = dma.hbm_to_vmem [thread:$0]  %s239, 128, %s242, %s231
        $region32: #{tpu_custom_call.1} parent=27 // pred_fallthru
          _
      $region28: #{tpu_custom_call.1} parent=5 // pred_fallthru
        _
      %p245 = scmp.le.s32.totalorder 1, %s18
      %p246 = scmp.lt.s32.totalorder %s18, 3
      %p247 = pnand %p245, %p246
      %p248 = pneg %p247
      // Predicated region
      $region33: #{tpu_custom_call.1} parent=5 // pred_check
        _
      $region34: #{tpu_custom_call.1} parent=5 // pred_check_branch
        %250 = sbr.rel (%p247) target = $region36
      $region35: #{tpu_custom_call.1} parent=5 // pred_region
        %s251 = ssub.s32 %s18, 1
        %s252 = sand.u32 %s43, 1
        %s253 = scalar_lea.sflag [#allocation4], %s252
        %s254 = sand.u32 %s43, 1
        %s255 = smul.addr %s254, 8
        %s256 = scalar_lea.vmem [#allocation3], %s255
        // Predicated region
        $region37: #{tpu_custom_call.1} parent=35 // pred_check
          %p257 = pneg %p56
        $region38: #{tpu_custom_call.1} parent=35 // pred_check_branch
          %259 = sbr.rel (%p257) target = $region40
        $region39: #{tpu_custom_call.1} parent=35 // pred_region
          %260 = dma.done %s253, 128
        $region40: #{tpu_custom_call.1} parent=35 // pred_fallthru
          _
        // Predicated region
        $region41: #{tpu_custom_call.1} parent=35 // pred_check
          %p261 = pneg %p82
        $region42: #{tpu_custom_call.1} parent=35 // pred_check_branch
          %263 = sbr.rel (%p261) target = $region44
        $region43: #{tpu_custom_call.1} parent=35 // pred_region
          %264 = dma.done [#allocation7], 4096
        $region44: #{tpu_custom_call.1} parent=35 // pred_fallthru
          _
        // Predicated region
        $region45: #{tpu_custom_call.1} parent=35 // pred_check
          %p265 = pneg %p108
        $region46: #{tpu_custom_call.1} parent=35 // pred_check_branch
          %267 = sbr.rel (%p265) target = $region48
        $region47: #{tpu_custom_call.1} parent=35 // pred_region
          %268 = dma.done [#allocation7], 4096
        $region48: #{tpu_custom_call.1} parent=35 // pred_fallthru
          _
        // Predicated region
        $region49: #{tpu_custom_call.1} parent=35 // pred_check
          %p269 = pneg %p134
        $region50: #{tpu_custom_call.1} parent=35 // pred_check_branch
          %271 = sbr.rel (%p269) target = $region52
        $region51: #{tpu_custom_call.1} parent=35 // pred_region
          %272 = dma.done [#allocation10], 4096
        $region52: #{tpu_custom_call.1} parent=35 // pred_fallthru
          _
        %s273 = sand.u32 %s43, 1
        %s274 = scalar_lea.sflag [#allocation4], %s273
        %s275 = sand.u32 %s43, 1
        %s276 = smul.addr %s275, 8
        %s277 = scalar_lea.vmem [#allocation3], %s276
        %p278 = pneg %p56
        %p279 = pneg %p53
        %p280 = pneg %p82
        %p281 = pneg %p79
        %p282 = pneg %p108
        %p283 = pneg %p105
        %p284 = pneg %p134
        %p285 = pneg %p131
        %p286 = pneg %p160
        %p287 = pneg %p157
        %s288 = sand.u32 %s147, 1
        %s289 = scalar_lea.sflag [#allocation5], %s288
        %s290 = sand.u32 %s147, 1
        %s291 = smul.addr %s290, 8
        %s292 = scalar_lea.vmem [#allocation11], %s291
        %s293 = smul.u32 2, %s28
        %s294 = smul.u32 2, %s28
        %s295 = smul.u32 32, %s28
        %p296 = scmp.eq.s32.totalorder %s28, 0
        // Predicated region
        $region53: #{tpu_custom_call.1} parent=35 // pred_check
          %p297 = pneg %p296
        $region54: #{tpu_custom_call.1} parent=35 // pred_check_branch
          %299 = sbr.rel (%p297) target = $region56
        $region55: #{tpu_custom_call.1} parent=35 // pred_region
          %300 = vst [vmem:[#allocation2] sm:$0xff] 0.0
        $region56: #{tpu_custom_call.1} parent=35 // pred_fallthru
          _
        %v301 = vld [vmem:[%s256] sm:$0xff]
        %v302 = vld [vmem:[#allocation6] sm:$0xff]
        %v303 = vld [vmem:[#allocation6 + $0x8] sm:$0xff]
        %v304 = vld [vmem:[#allocation6 + $0x10] sm:$0xff]
        %v305 = vld [vmem:[#allocation6 + $0x18] sm:$0xff]
        %v306 = vld [vmem:[#allocation6 + $0x20] sm:$0xff]
        %v307 = vld [vmem:[#allocation6 + $0x28] sm:$0xff]
        %v308 = vld [vmem:[#allocation6 + $0x30] sm:$0xff]
        %v309 = vld [vmem:[#allocation6 + $0x38] sm:$0xff]
        %v310 = vld [vmem:[#allocation6 + $0x40] sm:$0xff]
        %v311 = vld [vmem:[#allocation6 + $0x48] sm:$0xff]
        %v312 = vld [vmem:[#allocation6 + $0x50] sm:$0xff]
        %v313 = vld [vmem:[#allocation6 + $0x58] sm:$0xff]
        %v314 = vld [vmem:[#allocation6 + $0x60] sm:$0xff]
        %v315 = vld [vmem:[#allocation6 + $0x68] sm:$0xff]
        %v316 = vld [vmem:[#allocation6 + $0x70] sm:$0xff]
        %v317 = vld [vmem:[#allocation6 + $0x78] sm:$0xff]
        %v318 = vld [vmem:[#allocation6 + $0x80] sm:$0xff]
        %v319 = vld [vmem:[#allocation6 + $0x88] sm:$0xff]
        %v320 = vld [vmem:[#allocation6 + $0x90] sm:$0xff]
        %v321 = vld [vmem:[#allocation6 + $0x98] sm:$0xff]
        %v322 = vld [vmem:[#allocation6 + $0xa0] sm:$0xff]
        %v323 = vld [vmem:[#allocation6 + $0xa8] sm:$0xff]
        %v324 = vld [vmem:[#allocation6 + $0xb0] sm:$0xff]
        %v325 = vld [vmem:[#allocation6 + $0xb8] sm:$0xff]
        %v326 = vld [vmem:[#allocation6 + $0xc0] sm:$0xff]
        %v327 = vld [vmem:[#allocation6 + $0xc8] sm:$0xff]
        %v328 = vld [vmem:[#allocation6 + $0xd0] sm:$0xff]
        %v329 = vld [vmem:[#allocation6 + $0xd8] sm:$0xff]
        %v330 = vld [vmem:[#allocation6 + $0xe0] sm:$0xff]
        %v331 = vld [vmem:[#allocation6 + $0xe8] sm:$0xff]
        %v332 = vld [vmem:[#allocation6 + $0xf0] sm:$0xff]
        %v333 = vld [vmem:[#allocation6 + $0xf8] sm:$0xff]
        %334 = vmatprep.subr.mxu0 %v333
        %335 = vmatpush1.msra.mxu0 %v332
        %336 = vmatprep.subr.mxu0 %v331
        %337 = vmatpush1.msra.mxu0 %v330
        %338 = vmatprep.subr.mxu0 %v329
        %339 = vmatpush1.msra.mxu0 %v328
        %340 = vmatprep.subr.mxu0 %v327
        %341 = vmatpush1.msra.mxu0 %v326
        %342 = vmatprep.subr.mxu0 %v325
        %343 = vmatpush1.msra.mxu0 %v324
        %344 = vmatprep.subr.mxu0 %v323
        %345 = vmatpush1.msra.mxu0 %v322
        %346 = vmatprep.subr.mxu0 %v321
        %347 = vmatpush1.msra.mxu0 %v320
        %348 = vmatprep.subr.mxu0 %v319
        %349 = vmatpush1.msra.mxu0 %v318
        %350 = vmatprep.subr.mxu0 %v317
        %351 = vmatpush1.msra.mxu0 %v316
        %352 = vmatprep.subr.mxu0 %v315
        %353 = vmatpush1.msra.mxu0 %v314
        %354 = vmatprep.subr.mxu0 %v313
        %355 = vmatpush1.msra.mxu0 %v312
        %356 = vmatprep.subr.mxu0 %v311
        %357 = vmatpush1.msra.mxu0 %v310
        %358 = vmatprep.subr.mxu0 %v309
        %359 = vmatpush1.msra.mxu0 %v308
        %360 = vmatprep.subr.mxu0 %v307
        %361 = vmatpush1.msra.mxu0 %v306
        %362 = vmatprep.subr.mxu0 %v305
        %363 = vmatpush1.msra.mxu0 %v304
        %364 = vmatprep.subr.mxu0 %v303
        %365 = vmatpush1.msra.mxu0 %v302
        %366 = vmatprep.subr.mxu0 0.0
        %367 = vmatpush2.msra.mxu0 0.0
        %368 = vmatprep.subr.mxu0 0.0
        %369 = vmatpush2.msra.mxu0 0.0
        %370 = vmatprep.subr.mxu0 0.0
        %371 = vmatpush2.msra.mxu0 0.0
        %372 = vmatprep.subr.mxu0 0.0
        %373 = vmatpush2.msra.mxu0 0.0
        %374 = vmatprep.subr.mxu0 0.0
        %375 = vmatpush2.msra.mxu0 0.0
        %376 = vmatprep.subr.mxu0 0.0
        %377 = vmatpush2.msra.mxu0 0.0
        %378 = vmatprep.subr.mxu0 0.0
        %379 = vmatpush2.msra.mxu0 0.0
        %380 = vmatprep.subr.mxu0 0.0
        %381 = vmatpush2.msra.mxu0 0.0
        %382 = vmatprep.subr.mxu0 0.0
        %383 = vmatpush2.msra.mxu0 0.0
        %384 = vmatprep.subr.mxu0 0.0
        %385 = vmatpush2.msra.mxu0 0.0
        %386 = vmatprep.subr.mxu0 0.0
        %387 = vmatpush2.msra.mxu0 0.0
        %388 = vmatprep.subr.mxu0 0.0
        %389 = vmatpush2.msra.mxu0 0.0
        %390 = vmatprep.subr.mxu0 0.0
        %391 = vmatpush2.msra.mxu0 0.0
        %392 = vmatprep.subr.mxu0 0.0
        %393 = vmatpush2.msra.mxu0 0.0
        %394 = vmatprep.subr.mxu0 0.0
        %395 = vmatpush2.msra.mxu0 0.0
        %396 = vmatprep.subr.mxu0 0.0
        %397 = vmatpush2.msra.mxu0 0.0
        %398 = vmatprep.mubr.f32.mxu0 0.0
        %399 = vmatmul.mubr.f32.gmra.mxu0 %v301
        %v400 = vpop.f32.mrf.mxu0
        %v401 = vadd.f32 0.0, %v400
        %v402 = vpop.f32.mrf.mxu0
        %v403 = vadd.f32 0.0, %v402
        %404 = vdwg.mxu0
        %v405 = vld [vmem:[#allocation8] sm:$0xff]
        %v406 = vld [vmem:[#allocation8 + $0x8] sm:$0xff]
        %v407 = vld [vmem:[#allocation8 + $0x10] sm:$0xff]
        %v408 = vld [vmem:[#allocation8 + $0x18] sm:$0xff]
        %v409 = vld [vmem:[#allocation8 + $0x20] sm:$0xff]
        %v410 = vld [vmem:[#allocation8 + $0x28] sm:$0xff]
        %v411 = vld [vmem:[#allocation8 + $0x30] sm:$0xff]
        %v412 = vld [vmem:[#allocation8 + $0x38] sm:$0xff]
        %v413 = vld [vmem:[#allocation8 + $0x40] sm:$0xff]
        %v414 = vld [vmem:[#allocation8 + $0x48] sm:$0xff]
        %v415 = vld [vmem:[#allocation8 + $0x50] sm:$0xff]
        %v416 = vld [vmem:[#allocation8 + $0x58] sm:$0xff]
        %v417 = vld [vmem:[#allocation8 + $0x60] sm:$0xff]
        %v418 = vld [vmem:[#allocation8 + $0x68] sm:$0xff]
        %v419 = vld [vmem:[#allocation8 + $0x70] sm:$0xff]
        %v420 = vld [vmem:[#allocation8 + $0x78] sm:$0xff]
        %v421 = vld [vmem:[#allocation8 + $0x80] sm:$0xff]
        %v422 = vld [vmem:[#allocation8 + $0x88] sm:$0xff]
        %v423 = vld [vmem:[#allocation8 + $0x90] sm:$0xff]
        %v424 = vld [vmem:[#allocation8 + $0x98] sm:$0xff]
        %v425 = vld [vmem:[#allocation8 + $0xa0] sm:$0xff]
        %v426 = vld [vmem:[#allocation8 + $0xa8] sm:$0xff]
        %v427 = vld [vmem:[#allocation8 + $0xb0] sm:$0xff]
        %v428 = vld [vmem:[#allocation8 + $0xb8] sm:$0xff]
        %v429 = vld [vmem:[#allocation8 + $0xc0] sm:$0xff]
        %v430 = vld [vmem:[#allocation8 + $0xc8] sm:$0xff]
        %v431 = vld [vmem:[#allocation8 + $0xd0] sm:$0xff]
        %v432 = vld [vmem:[#allocation8 + $0xd8] sm:$0xff]
        %v433 = vld [vmem:[#allocation8 + $0xe0] sm:$0xff]
        %v434 = vld [vmem:[#allocation8 + $0xe8] sm:$0xff]
        %v435 = vld [vmem:[#allocation8 + $0xf0] sm:$0xff]
        %v436 = vld [vmem:[#allocation8 + $0xf8] sm:$0xff]
        %437 = vmatprep.subr.mxu0 %v436
        %438 = vmatpush1.msra.mxu0 %v435
        %439 = vmatprep.subr.mxu0 %v434
        %440 = vmatpush1.msra.mxu0 %v433
        %441 = vmatprep.subr.mxu0 %v432
        %442 = vmatpush1.msra.mxu0 %v431
        %443 = vmatprep.subr.mxu0 %v430
        %444 = vmatpush1.msra.mxu0 %v429
        %445 = vmatprep.subr.mxu0 %v428
        %446 = vmatpush1.msra.mxu0 %v427
        %447 = vmatprep.subr.mxu0 %v426
        %448 = vmatpush1.msra.mxu0 %v425
        %449 = vmatprep.subr.mxu0 %v424
        %450 = vmatpush1.msra.mxu0 %v423
        %451 = vmatprep.subr.mxu0 %v422
        %452 = vmatpush1.msra.mxu0 %v421
        %453 = vmatprep.subr.mxu0 %v420
        %454 = vmatpush1.msra.mxu0 %v419
        %455 = vmatprep.subr.mxu0 %v418
        %456 = vmatpush1.msra.mxu0 %v417
        %457 = vmatprep.subr.mxu0 %v416
        %458 = vmatpush1.msra.mxu0 %v415
        %459 = vmatprep.subr.mxu0 %v414
        %460 = vmatpush1.msra.mxu0 %v413
        %461 = vmatprep.subr.mxu0 %v412
        %462 = vmatpush1.msra.mxu0 %v411
        %463 = vmatprep.subr.mxu0 %v410
        %464 = vmatpush1.msra.mxu0 %v409
        %465 = vmatprep.subr.mxu0 %v408
        %466 = vmatpush1.msra.mxu0 %v407
        %467 = vmatprep.subr.mxu0 %v406
        %468 = vmatpush1.msra.mxu0 %v405
        %469 = vmatprep.subr.mxu0 0.0
        %470 = vmatpush2.msra.mxu0 0.0
        %471 = vmatprep.subr.mxu0 0.0
        %472 = vmatpush2.msra.mxu0 0.0
        %473 = vmatprep.subr.mxu0 0.0
        %474 = vmatpush2.msra.mxu0 0.0
        %475 = vmatprep.subr.mxu0 0.0
        %476 = vmatpush2.msra.mxu0 0.0
        %477 = vmatprep.subr.mxu0 0.0
        %478 = vmatpush2.msra.mxu0 0.0
        %479 = vmatprep.subr.mxu0 0.0
        %480 = vmatpush2.msra.mxu0 0.0
        %481 = vmatprep.subr.mxu0 0.0
        %482 = vmatpush2.msra.mxu0 0.0
        %483 = vmatprep.subr.mxu0 0.0
        %484 = vmatpush2.msra.mxu0 0.0
        %485 = vmatprep.subr.mxu0 0.0
        %486 = vmatpush2.msra.mxu0 0.0
        %487 = vmatprep.subr.mxu0 0.0
        %488 = vmatpush2.msra.mxu0 0.0
        %489 = vmatprep.subr.mxu0 0.0
        %490 = vmatpush2.msra.mxu0 0.0
        %491 = vmatprep.subr.mxu0 0.0
        %492 = vmatpush2.msra.mxu0 0.0
        %493 = vmatprep.subr.mxu0 0.0
        %494 = vmatpush2.msra.mxu0 0.0
        %495 = vmatprep.subr.mxu0 0.0
        %496 = vmatpush2.msra.mxu0 0.0
        %497 = vmatprep.subr.mxu0 0.0
        %498 = vmatpush2.msra.mxu0 0.0
        %499 = vmatprep.subr.mxu0 0.0
        %500 = vmatpush2.msra.mxu0 0.0
        %501 = vmatprep.mubr.f32.mxu0 0.0
        %502 = vmatmul.mubr.f32.gmra.mxu0 %v301
        %v503 = vpop.f32.mrf.mxu0
        %v504 = vadd.f32 0.0, %v503
        %v505 = vpop.f32.mrf.mxu0
        %v506 = vadd.f32 0.0, %v505
        %507 = vdwg.mxu0
        %v508 = vsub.f32 0.0, %v401
        %v509 = vsub.f32 0.0, %v403
        %v510 = vmul.f32 %v508, 1.442695
        %v511 = vpow.pop %v510
        %v512 = vmul.f32 %v509, 1.442695
        %v513 = vpow.pop %v512
        %v514 = vadd.f32 %v511, 1.0
        %v515 = vadd.f32 %v513, 1.0
        %v516 = vrcp.pop %v514
        %v517 = vrcp.pop %v515
        %v518 = vmul.f32 %v401, %v516
        %v519 = vmul.f32 %v403, %v517
        %v520 = vmul.f32 %v518, %v504
        %v521 = vmul.f32 %v519, %v506
        %v522 = vld [vmem:[#allocation2] sm:$0xff]
        %v523 = vld [vmem:[#allocation9] sm:$0xff]
        %v524 = vld [vmem:[#allocation9 + $0x8] sm:$0xff]
        %v525 = vld [vmem:[#allocation9 + $0x10] sm:$0xff]
        %v526 = vld [vmem:[#allocation9 + $0x18] sm:$0xff]
        %v527 = vld [vmem:[#allocation9 + $0x20] sm:$0xff]
        %v528 = vld [vmem:[#allocation9 + $0x28] sm:$0xff]
        %v529 = vld [vmem:[#allocation9 + $0x30] sm:$0xff]
        %v530 = vld [vmem:[#allocation9 + $0x38] sm:$0xff]
        %v531 = vld [vmem:[#allocation9 + $0x40] sm:$0xff]
        %v532 = vld [vmem:[#allocation9 + $0x48] sm:$0xff]
        %v533 = vld [vmem:[#allocation9 + $0x50] sm:$0xff]
        %v534 = vld [vmem:[#allocation9 + $0x58] sm:$0xff]
        %v535 = vld [vmem:[#allocation9 + $0x60] sm:$0xff]
        %v536 = vld [vmem:[#allocation9 + $0x68] sm:$0xff]
        %v537 = vld [vmem:[#allocation9 + $0x70] sm:$0xff]
        %v538 = vld [vmem:[#allocation9 + $0x78] sm:$0xff]
        %v539 = vld [vmem:[#allocation9 + $0x80] sm:$0xff]
        %v540 = vld [vmem:[#allocation9 + $0x88] sm:$0xff]
        %v541 = vld [vmem:[#allocation9 + $0x90] sm:$0xff]
        %v542 = vld [vmem:[#allocation9 + $0x98] sm:$0xff]
        %v543 = vld [vmem:[#allocation9 + $0xa0] sm:$0xff]
        %v544 = vld [vmem:[#allocation9 + $0xa8] sm:$0xff]
        %v545 = vld [vmem:[#allocation9 + $0xb0] sm:$0xff]
        %v546 = vld [vmem:[#allocation9 + $0xb8] sm:$0xff]
        %v547 = vld [vmem:[#allocation9 + $0xc0] sm:$0xff]
        %v548 = vld [vmem:[#allocation9 + $0xc8] sm:$0xff]
        %v549 = vld [vmem:[#allocation9 + $0xd0] sm:$0xff]
        %v550 = vld [vmem:[#allocation9 + $0xd8] sm:$0xff]
        %v551 = vld [vmem:[#allocation9 + $0xe0] sm:$0xff]
        %v552 = vld [vmem:[#allocation9 + $0xe8] sm:$0xff]
        %v553 = vld [vmem:[#allocation9 + $0xf0] sm:$0xff]
        %v554 = vld [vmem:[#allocation9 + $0xf8] sm:$0xff]
        %555 = vmatprep.subr.mxu0 0.0
        %556 = vmatpush1.msra.mxu0 %v538
        %557 = vmatprep.subr.mxu0 0.0
        %558 = vmatpush1.msra.mxu0 %v537
        %559 = vmatprep.subr.mxu0 0.0
        %560 = vmatpush1.msra.mxu0 %v536
        %561 = vmatprep.subr.mxu0 0.0
        %562 = vmatpush1.msra.mxu0 %v535
        %563 = vmatprep.subr.mxu0 0.0
        %564 = vmatpush1.msra.mxu0 %v534
        %565 = vmatprep.subr.mxu0 0.0
        %566 = vmatpush1.msra.mxu0 %v533
        %567 = vmatprep.subr.mxu0 0.0
        %568 = vmatpush1.msra.mxu0 %v532
        %569 = vmatprep.subr.mxu0 0.0
        %570 = vmatpush1.msra.mxu0 %v531
        %571 = vmatprep.subr.mxu0 0.0
        %572 = vmatpush1.msra.mxu0 %v530
        %573 = vmatprep.subr.mxu0 0.0
        %574 = vmatpush1.msra.mxu0 %v529
        %575 = vmatprep.subr.mxu0 0.0
        %576 = vmatpush1.msra.mxu0 %v528
        %577 = vmatprep.subr.mxu0 0.0
        %578 = vmatpush1.msra.mxu0 %v527
        %579 = vmatprep.subr.mxu0 0.0
        %580 = vmatpush1.msra.mxu0 %v526
        %581 = vmatprep.subr.mxu0 0.0
        %582 = vmatpush1.msra.mxu0 %v525
        %583 = vmatprep.subr.mxu0 0.0
        %584 = vmatpush1.msra.mxu0 %v524
        %585 = vmatprep.subr.mxu0 0.0
        %586 = vmatpush1.msra.mxu0 %v523
        %587 = vmatprep.subr.mxu0 0.0
        %588 = vmatpush2.msra.mxu0 %v554
        %589 = vmatprep.subr.mxu0 0.0
        %590 = vmatpush2.msra.mxu0 %v553
        %591 = vmatprep.subr.mxu0 0.0
        %592 = vmatpush2.msra.mxu0 %v552
        %593 = vmatprep.subr.mxu0 0.0
        %594 = vmatpush2.msra.mxu0 %v551
        %595 = vmatprep.subr.mxu0 0.0
        %596 = vmatpush2.msra.mxu0 %v550
        %597 = vmatprep.subr.mxu0 0.0
        %598 = vmatpush2.msra.mxu0 %v549
        %599 = vmatprep.subr.mxu0 0.0
        %600 = vmatpush2.msra.mxu0 %v548
        %601 = vmatprep.subr.mxu0 0.0
        %602 = vmatpush2.msra.mxu0 %v547
        %603 = vmatprep.subr.mxu0 0.0
        %604 = vmatpush2.msra.mxu0 %v546
        %605 = vmatprep.subr.mxu0 0.0
        %606 = vmatpush2.msra.mxu0 %v545
        %607 = vmatprep.subr.mxu0 0.0
        %608 = vmatpush2.msra.mxu0 %v544
        %609 = vmatprep.subr.mxu0 0.0
        %610 = vmatpush2.msra.mxu0 %v543
        %611 = vmatprep.subr.mxu0 0.0
        %612 = vmatpush2.msra.mxu0 %v542
        %613 = vmatprep.subr.mxu0 0.0
        %614 = vmatpush2.msra.mxu0 %v541
        %615 = vmatprep.subr.mxu0 0.0
        %616 = vmatpush2.msra.mxu0 %v540
        %617 = vmatprep.subr.mxu0 0.0
        %618 = vmatpush2.msra.mxu0 %v539
        %619 = vmatprep.mubr.f32.mxu0 %v521
        %620 = vmatmul.mubr.f32.gmra.mxu0 %v520
        %v621 = vpop.f32.mrf.mxu0
        %v622 = vadd.f32 0.0, %v621
        %v623 = vpop.f32.mrf.mxu0
        %624 = vdwg.mxu0
        %v625 = vadd.f32 %v522, %v622
        %626 = vst [vmem:[#allocation2] sm:$0xff] %v625
        // Predicated region
        $region57: #{tpu_custom_call.1} parent=35 // pred_check
          %p627 = pneg %p296
        $region58: #{tpu_custom_call.1} parent=35 // pred_check_branch
          %629 = sbr.rel (%p627) target = $region60
        $region59: #{tpu_custom_call.1} parent=35 // pred_region
          %v630 = vld [vmem:[#allocation2] sm:$0xff]
          %631 = vst [vmem:[%s292] sm:$0xff] %v630
        $region60: #{tpu_custom_call.1} parent=35 // pred_fallthru
          _
        %s632 = sand.u32 %s147, 1
        %s633 = scalar_lea.sflag [#allocation5], %s632
        %s634 = sand.u32 %s147, 1
        %s635 = smul.addr %s634, 8
        %s636 = scalar_lea.vmem [#allocation11], %s635
        // Predicated region
        $region61: #{tpu_custom_call.1} parent=35 // pred_check
          %p637 = pneg %p157
        $region62: #{tpu_custom_call.1} parent=35 // pred_check_branch
          %639 = sbr.rel (%p637) target = $region64
        $region63: #{tpu_custom_call.1} parent=35 // pred_region
          %s641 = ssub.s32 128, 128
          %642 = vsyncadd %s633, %s641
          %s643 = smul.addr %s27, 128
          %s644 = scalar_lea.hbm %s4, %s643
          %s646 = sshll.u32 %s636, 4
          %s647 = int_to_ptr.vmem [resolvable:$true] %s646
          %649 = dma.vmem_to_hbm [thread:$0]  %s647, 128, %s644, %s633
        $region64: #{tpu_custom_call.1} parent=35 // pred_fallthru
          _
      $region36: #{tpu_custom_call.1} parent=5 // pred_fallthru
        _
      %p650 = scmp.le.s32.totalorder 2, %s18
      // Predicated region
      $region65: #{tpu_custom_call.1} parent=5 // pred_check
        %p651 = pneg %p650
      $region66: #{tpu_custom_call.1} parent=5 // pred_check_branch
        %653 = sbr.rel (%p651) target = $region68
      $region67: #{tpu_custom_call.1} parent=5 // pred_region
        %s654 = ssub.s32 %s18, 2
        // Predicated region
        $region69: #{tpu_custom_call.1} parent=67 // pred_check
          %p655 = pneg %p163
        $region70: #{tpu_custom_call.1} parent=67 // pred_check_branch
          %657 = sbr.rel (%p655) target = $region72
        $region71: #{tpu_custom_call.1} parent=67 // pred_region
          %s658 = sand.u32 %s148, 1
          %s659 = scalar_lea.sflag [#allocation5], %s658
          %s660 = sand.u32 %s148, 1
          %s661 = smul.addr %s660, 8
          %s662 = scalar_lea.vmem [#allocation11], %s661
          %663 = dma.done %s659, 128
        $region72: #{tpu_custom_call.1} parent=67 // pred_fallthru
          _
      $region68: #{tpu_custom_call.1} parent=5 // pred_fallthru
        _
    $region6: #{tpu_custom_call.1} parent=1 // loop_footer
      %s22 = sadd.s32 1, %s18
    $region7: #{tpu_custom_call.1} parent=1 // loop_footer_branch
      %17 = sbr.rel target = $region3
    $region8: #{tpu_custom_call.1} parent=1 // loop_exit
      _
    %664 = vsyncpa [#allocation4], 1
    %s665 = scalar_lea.sflag [#allocation4], 1
    %666 = vsyncpa %s665, 1
    %667 = vsyncpa [#allocation7], 1
    %668 = vsyncpa [#allocation10], 1
    %669 = vsyncpa [#allocation5], 1
    %s670 = scalar_lea.sflag [#allocation5], 1
    %671 = vsyncpa %s670, 1

</llo_original>
